<compile_context>
chip_gen: v5e
topology: v5e:2x2
jax: 0.10.0
libtpu: 0.0.40
codegen_flags: <defaults>
</compile_context>

<pallas_src>
import functools
import math
from typing import NamedTuple, Tuple

import jax
import jax.numpy as jnp
from jax.experimental import pallas as pl
from jax.experimental.pallas import tpu as pltpu


_LANE = 128              # lane width (last dim)
_SUBLANE = 8             # sublane width (second-to-last dim)
_TILE_M = 256            # batch tile when the batch axis is gridded
_MAX_UNTILED_BATCH = 256 # up to this many rows: grid-less single VMEM shot


def _round_up(n, m):
    return ((n + m - 1) // m) * m


def _pad2d(a, rows, cols):
    return jnp.pad(a, ((0, rows - a.shape[0]), (0, cols - a.shape[1])))


class KernelConfig(NamedTuple):
    """Static (hashable) layout config, closed over by the jitted forward."""
    in_pad: int
    ctx_pad: int
    hidden_pads: Tuple[int, ...]
    out_pad: int
    num_segments: int
    output_size: int
    seg_offsets: Tuple[int, ...]   # per-layer column offset into sw_all


# ----------------------------------------------------------------------------
# Fused Pallas kernel: all hidden dendritic layers + classifier head in VMEM.
# Ref layout: (x, ctx, sw_all, [w_i, b_i] * num_hidden, w_out, b_out, out)
# ----------------------------------------------------------------------------
def _fused_mlp_kernel(*refs, cfg):
    nh = len(cfg.hidden_pads)
    x_ref, ctx_ref, sw_ref = refs[0], refs[1], refs[2]
    wb_refs = refs[3:3 + 2 * nh]
    wo_ref, bo_ref = refs[3 + 2 * nh], refs[4 + 2 * nh]
    out_ref = refs[-1]

    # One wide MXU matmul for every dendrite segment of every hidden layer:
    # ctx is layer-invariant, so [B,Kp] @ [Kp, sum_l S*Hp_l] replaces L
    # separate pushes and gives the scheduler VPU gating work to overlap with
    # the dependent feedforward dots below.
    ctx = ctx_ref[...].astype(sw_ref.dtype)
    d_all = jnp.dot(ctx, sw_ref[...], preferred_element_type=jnp.float32)

    h = x_ref[...]
    for li in range(nh):
        hp = cfg.hidden_pads[li]
        off = cfg.seg_offsets[li]
        w_ref, b_ref = wb_refs[2 * li], wb_refs[2 * li + 1]

        # feedforward: y = x @ W (pre-transposed [in, out]) + b, f32 accumulate
        y = jnp.dot(h.astype(w_ref.dtype), w_ref[...],
                    preferred_element_type=jnp.float32) + b_ref[...]

        # absolute-max over segments in ascending order; strict '>' keeps the
        # first occurrence on ties (matches torch abs().max(dim=2) + gather).
        best_val = d_all[:, off:off + hp]
        best_abs = jnp.abs(best_val)
        for s in range(1, cfg.num_segments):
            ds = d_all[:, off + s * hp: off + (s + 1) * hp]
            abs_ds = jnp.abs(ds)
            take = abs_ds > best_abs
            best_val = jnp.where(take, ds, best_val)
            best_abs = jnp.where(take, abs_ds, best_abs)

        # absolute-max gating + ReLU (kw=False path of the module)
        h = jnp.maximum(y * jax.nn.sigmoid(best_val), 0.0)

    out_ref[...] = (jnp.dot(h.astype(wo_ref.dtype), wo_ref[...],
                            preferred_element_type=jnp.float32) + bo_ref[...])


# ----------------------------------------------------------------------------
# Parameter construction (matches module __init__ semantics), torch layout.
# ----------------------------------------------------------------------------
def init_params(key, input_size, hidden_sizes, output_size, num_segments,
                dim_context, weight_sparsity=0.95):
    params = {"hidden": [], "out": None}
    in_size = input_size
    weight_density = 1.0 - weight_sparsity

    for h in hidden_sizes:
        key, kw_, kb_, ks_, km_ = jax.random.split(key, 5)
        # _init_sparse_weights: uniform(-bound, bound), input_density = 1.0
        bound = 1.0 / math.sqrt(1.0 * weight_density * in_size)
        w = jax.random.uniform(kw_, (h, in_size), jnp.float32, -bound, bound)
        # SparseWeights mask at weight_sparsity (rezero_weights)
        mask = jax.random.bernoulli(km_, weight_density, (h, in_size))
        w = w * mask.astype(jnp.float32)
        # nn.Linear default bias init: uniform(-1/sqrt(fan_in), 1/sqrt(fan_in))
        bb = 1.0 / math.sqrt(in_size)
        b = jax.random.uniform(kb_, (1, h), jnp.float32, -bb, bb)
        # _init_sparse_dendrites: dendrite_sparsity=0, context_percent_on=1
        sb = 1.0 / math.sqrt(dim_context)
        seg_w = jax.random.uniform(
            ks_, (h, num_segments, dim_context), jnp.float32, -sb, sb)
        params["hidden"].append((w, b, seg_w))
        in_size = h

    key, kw_, kb_, km_ = jax.random.split(key, 4)
    bound = 1.0 / math.sqrt(1.0 * weight_density * in_size)
    w_out = jax.random.uniform(kw_, (output_size, in_size), jnp.float32,
                               -bound, bound)
    mask = jax.random.bernoulli(km_, weight_density, (output_size, in_size))
    w_out = w_out * mask.astype(jnp.float32)
    bb = 1.0 / math.sqrt(in_size)
    b_out = jax.random.uniform(kb_, (1, output_size), jnp.float32, -bb, bb)
    params["out"] = (w_out, b_out)
    return params


def pack_params(params, input_size, hidden_sizes, output_size, num_segments,
                dim_context, weights_dtype=jnp.bfloat16):
    """Pad + pre-transpose parameters into the MXU-friendly kernel layout.

    Matmul weights are stored in `weights_dtype` (bf16 by default -> native
    MXU dtype, half the weight bytes); biases stay f32, accumulation is f32.
    Returns (weights_pytree, KernelConfig).
    """
    in_pad = _round_up(input_size, _LANE)
    ctx_pad = _round_up(dim_context, _LANE)
    hidden_pads = tuple(_round_up(h, _LANE) for h in hidden_sizes)
    out_pad = _round_up(output_size, _LANE)

    ws, bs, sw_blocks, seg_offsets = [], [], [], []
    col = 0
    prev_pad = in_pad
    for (w, b, seg_w), hp in zip(params["hidden"], hidden_pads):
        # feedforward weight [H, Din] -> transposed + zero-padded [Din_p, Hp]
        ws.append(_pad2d(w.T, prev_pad, hp).astype(weights_dtype))
        bs.append(_pad2d(b, 1, hp))                        # f32
        # dendrite segments [H, S, K] -> [K, S, H] -> pad -> flatten [Kp, S*Hp]
        sw = jnp.transpose(seg_w, (2, 1, 0))
        sw = jnp.pad(sw, ((0, ctx_pad - sw.shape[0]), (0, 0),
                          (0, hp - sw.shape[2])))
        sw_blocks.append(sw.reshape(ctx_pad, num_segments * hp))
        seg_offsets.append(col)
        col += num_segments * hp
        prev_pad = hp

    w_out, b_out = params["out"]
    weights = {
        "w": ws,
        "b": bs,
        # every layer's dendrite weights concatenated -> ONE wide matmul operand
        "sw_all": jnp.concatenate(sw_blocks, axis=1).astype(weights_dtype),
        "w_out": _pad2d(w_out.T, prev_pad, out_pad).astype(weights_dtype),
        "b_out": _pad2d(b_out, 1, out_pad),
    }
    cfg = KernelConfig(in_pad=in_pad, ctx_pad=ctx_pad, hidden_pads=hidden_pads,
                       out_pad=out_pad, num_segments=num_segments,
                       output_size=output_size, seg_offsets=tuple(seg_offsets))
    return weights, cfg


# ----------------------------------------------------------------------------
# Forward wrapper: pad activations, run the fused kernel, slice the padding.
# Intended to be wrapped in jax.jit with cfg closed over (static).
# ----------------------------------------------------------------------------
def dendritic_mlp_forward(weights, x, context, *, cfg):
    batch = x.shape[0]
    kernel = functools.partial(_fused_mlp_kernel, cfg=cfg)

    weight_ops = [weights["sw_all"]]
    for w_t, b_p in zip(weights["w"], weights["b"]):
        weight_ops += [w_t, b_p]
    weight_ops += [weights["w_out"], weights["b_out"]]

    if batch <= _MAX_UNTILED_BATCH:
        # Latency-bound single shot: no grid, whole problem resident in VMEM.
        # (No vmem_limit_bytes request: footprint is far below the scoped
        #  default on v5e/v6e/v7x; asking for 64 MiB would be v7x-unsafe.)
        b_pad = _round_up(max(batch, 1), _SUBLANE)
        x_p = _pad2d(x.astype(jnp.float32), b_pad, cfg.in_pad)
        ctx_p = _pad2d(context.astype(jnp.float32), b_pad, cfg.ctx_pad)
        operands = [x_p, ctx_p] + weight_ops
        out_p = pl.pallas_call(
            kernel,
            out_shape=jax.ShapeDtypeStruct((b_pad, cfg.out_pad), jnp.float32),
            in_specs=[pl.BlockSpec(memory_space=pltpu.MemorySpace.VMEM)
                      for _ in operands],
            out_specs=pl.BlockSpec(memory_space=pltpu.MemorySpace.VMEM),
        )(*operands)
    else:
        # Large batch: tile batch over a parallel grid axis (pipelines, and
        # shards across both TensorCores on v7x).  Weight index maps are
        # batch-invariant so weights stay VMEM resident across steps.
        b_pad = _round_up(batch, _TILE_M)
        x_p = _pad2d(x.astype(jnp.float32), b_pad, cfg.in_pad)
        ctx_p = _pad2d(context.astype(jnp.float32), b_pad, cfg.ctx_pad)
        operands = [x_p, ctx_p] + weight_ops
        in_specs = [pl.BlockSpec((_TILE_M, cfg.in_pad), lambda i: (i, 0)),
                    pl.BlockSpec((_TILE_M, cfg.ctx_pad), lambda i: (i, 0))]
        in_specs += [pl.BlockSpec(op.shape, lambda i: (0, 0))
                     for op in weight_ops]
        out_p = pl.pallas_call(
            kernel,
            out_shape=jax.ShapeDtypeStruct((b_pad, cfg.out_pad), jnp.float32),
            grid=(b_pad // _TILE_M,),
            in_specs=in_specs,
            out_specs=pl.BlockSpec((_TILE_M, cfg.out_pad), lambda i: (i, 0)),
            compiler_params=pltpu.CompilerParams(
                dimension_semantics=("parallel",)),
        )(*operands)
        # TODO(synk): at production sizes (e.g. 10 segments x 2-3k units, ~1k
        # context) also tile sw_all's column axis so each dendrite slab fits
        # v7x's 64 MiB VMEM.

    return out_p[:batch, :cfg.output_size]


# ----------------------------------------------------------------------------
# Pure-JAX reference (torch-layout params).  With weights_dtype=bf16 it mirrors
# the kernel's numerics (bf16 matmul operands, f32 accumulation).
# ----------------------------------------------------------------------------
def dendritic_mlp_reference(params, x, context, weights_dtype=jnp.float32):
    def dot(a, b):
        return jnp.dot(a.astype(weights_dtype), b.astype(weights_dtype),
                       preferred_element_type=jnp.float32)

    h = x
    for (w, b, seg_w) in params["hidden"]:
        y = dot(h, w.T) + b
        act = jnp.einsum("hsk,bk->bhs", seg_w.astype(weights_dtype),
                         context.astype(weights_dtype),
                         preferred_element_type=jnp.float32)      # [B, H, S]
        idx = jnp.argmax(jnp.abs(act), axis=2)
        win = jnp.take_along_axis(act, idx[..., None], axis=2)[..., 0]
        h = jnp.maximum(y * jax.nn.sigmoid(win), 0.0)
    w_out, b_out = params["out"]
    return dot(h, w_out.T) + b_out


if __name__ == "__main__":
    batch = 2
    input_size = 16
    hidden_sizes = [32, 32]
    output_size = 10
    num_segments = 4
    dim_context = 8

    key = jax.random.PRNGKey(0)
    kp, kx, kc = jax.random.split(key, 3)

    params = init_params(kp, input_size, hidden_sizes, output_size,
                         num_segments, dim_context)
    x = jax.random.normal(kx, (batch, input_size), jnp.float32)
    context = jax.random.normal(kc, (batch, dim_context), jnp.float32)

    # --- exact-semantics check: f32 weights vs. f32 reference (1e-5) --------
    w_f32, cfg = pack_params(params, input_size, hidden_sizes, output_size,
                             num_segments, dim_context,
                             weights_dtype=jnp.float32)
    fwd = jax.jit(functools.partial(dendritic_mlp_forward, cfg=cfg))
    out_f32 = jax.block_until_ready(fwd(w_f32, x, context))
    ref_f32 = dendritic_mlp_reference(params, x, context)
    assert out_f32.shape == (batch, output_size)
    assert jnp.allclose(out_f32, ref_f32, atol=1e-5, rtol=1e-5), \
        "f32 kernel mismatch vs f32 reference"

    # --- production config: bf16 matmul weights (native MXU dtype) ----------
    w_bf16, _ = pack_params(params, input_size, hidden_sizes, output_size,
                            num_segments, dim_context,
                            weights_dtype=jnp.bfloat16)
    out_bf16 = jax.block_until_ready(fwd(w_bf16, x, context))
    ref_bf16 = dendritic_mlp_reference(params, x, context,
                                       weights_dtype=jnp.bfloat16)
    assert out_bf16.shape == (batch, output_size)
    assert jnp.allclose(out_bf16, ref_bf16, atol=2e-2, rtol=2e-2), \
        "bf16 kernel mismatch vs bf16 reference"

    print("KERNEL_OK")
</pallas_src>

<mosaic_0001>
module attributes {stable_mosaic.version = 11 : i64} {
  func.func @_fused_mlp_kernel(%arg0: memref<8x128xf32, #tpu.memory_space<vmem>>, %arg1: memref<8x128xf32, #tpu.memory_space<vmem>>, %arg2: memref<128x1024xf32, #tpu.memory_space<vmem>>, %arg3: memref<128x128xf32, #tpu.memory_space<vmem>>, %arg4: memref<1x128xf32, #tpu.memory_space<vmem>>, %arg5: memref<128x128xf32, #tpu.memory_space<vmem>>, %arg6: memref<1x128xf32, #tpu.memory_space<vmem>>, %arg7: memref<128x128xf32, #tpu.memory_space<vmem>>, %arg8: memref<1x128xf32, #tpu.memory_space<vmem>>, %arg9: memref<8x128xf32, #tpu.memory_space<vmem>>) attributes {dimension_semantics = [], scalar_prefetch = 0 : i64, scratch_operands = 0 : i64, tpu.core_type = #tpu.core_type<tc>} {
    %c0 = arith.constant 0 : index
    %c0_0 = arith.constant 0 : index
    %0 = vector.load %arg1[%c0, %c0_0] : memref<8x128xf32, #tpu.memory_space<vmem>>, vector<8x128xf32>
    %c0_1 = arith.constant 0 : index
    %c0_2 = arith.constant 0 : index
    %1 = vector.load %arg2[%c0_1, %c0_2] : memref<128x1024xf32, #tpu.memory_space<vmem>>, vector<128x1024xf32>
    %cst = arith.constant dense<0.000000e+00> : vector<8x1024xf32>
    %2 = tpu.matmul %0, %1, %cst {dimension_numbers = #tpu.dot_dimension_numbers<[1], [0], [0], [1], [0, 0, 1, 1], [], []>} : vector<8x128xf32>, vector<128x1024xf32>, vector<8x1024xf32> -> vector<8x1024xf32>
    %c0_3 = arith.constant 0 : index
    %c0_4 = arith.constant 0 : index
    %3 = vector.load %arg0[%c0_3, %c0_4] : memref<8x128xf32, #tpu.memory_space<vmem>>, vector<8x128xf32>
    %c0_5 = arith.constant 0 : index
    %c0_6 = arith.constant 0 : index
    %4 = vector.load %arg3[%c0_5, %c0_6] : memref<128x128xf32, #tpu.memory_space<vmem>>, vector<128x128xf32>
    %cst_7 = arith.constant dense<0.000000e+00> : vector<8x128xf32>
    %5 = tpu.matmul %3, %4, %cst_7 {dimension_numbers = #tpu.dot_dimension_numbers<[1], [0], [0], [1], [0, 0, 1, 1], [], []>} : vector<8x128xf32>, vector<128x128xf32>, vector<8x128xf32> -> vector<8x128xf32>
    %c0_8 = arith.constant 0 : index
    %c0_9 = arith.constant 0 : index
    %6 = vector.load %arg4[%c0_8, %c0_9] : memref<1x128xf32, #tpu.memory_space<vmem>>, vector<1x128xf32>
    %7 = vector.broadcast %6 : vector<1x128xf32> to vector<8x128xf32>
    %8 = arith.addf %5, %7 : vector<8x128xf32>
    %9 = vector.extract_strided_slice %2 {offsets = [0, 0], sizes = [8, 128], strides = [1, 1]} : vector<8x1024xf32> to vector<8x128xf32>
    %10 = math.absf %9 : vector<8x128xf32>
    %11 = vector.extract_strided_slice %2 {offsets = [0, 128], sizes = [8, 128], strides = [1, 1]} : vector<8x1024xf32> to vector<8x128xf32>
    %12 = math.absf %11 : vector<8x128xf32>
    %13 = arith.cmpf ogt, %12, %10 : vector<8x128xf32>
    %14 = arith.select %13, %11, %9 : vector<8x128xi1>, vector<8x128xf32>
    %15 = arith.select %13, %12, %10 : vector<8x128xi1>, vector<8x128xf32>
    %16 = vector.extract_strided_slice %2 {offsets = [0, 256], sizes = [8, 128], strides = [1, 1]} : vector<8x1024xf32> to vector<8x128xf32>
    %17 = math.absf %16 : vector<8x128xf32>
    %18 = arith.cmpf ogt, %17, %15 : vector<8x128xf32>
    %19 = arith.select %18, %16, %14 : vector<8x128xi1>, vector<8x128xf32>
    %20 = arith.select %18, %17, %15 : vector<8x128xi1>, vector<8x128xf32>
    %21 = vector.extract_strided_slice %2 {offsets = [0, 384], sizes = [8, 128], strides = [1, 1]} : vector<8x1024xf32> to vector<8x128xf32>
    %22 = math.absf %21 : vector<8x128xf32>
    %23 = arith.cmpf ogt, %22, %20 : vector<8x128xf32>
    %24 = arith.select %23, %21, %19 : vector<8x128xi1>, vector<8x128xf32>
    %25 = arith.negf %24 : vector<8x128xf32>
    %26 = math.exp %25 : vector<8x128xf32>
    %cst_10 = arith.constant 1.000000e+00 : f32
    %27 = vector.broadcast %cst_10 : f32 to vector<8x128xf32>
    %28 = arith.addf %27, %26 : vector<8x128xf32>
    %29 = arith.divf %27, %28 : vector<8x128xf32>
    %30 = arith.mulf %8, %29 : vector<8x128xf32>
    %cst_11 = arith.constant 0.000000e+00 : f32
    %31 = vector.broadcast %cst_11 : f32 to vector<8x128xf32>
    %32 = arith.maximumf %30, %31 : vector<8x128xf32>
    %c0_12 = arith.constant 0 : index
    %c0_13 = arith.constant 0 : index
    %33 = vector.load %arg5[%c0_12, %c0_13] : memref<128x128xf32, #tpu.memory_space<vmem>>, vector<128x128xf32>
    %cst_14 = arith.constant dense<0.000000e+00> : vector<8x128xf32>
    %34 = tpu.matmul %32, %33, %cst_14 {dimension_numbers = #tpu.dot_dimension_numbers<[1], [0], [0], [1], [0, 0, 1, 1], [], []>} : vector<8x128xf32>, vector<128x128xf32>, vector<8x128xf32> -> vector<8x128xf32>
    %c0_15 = arith.constant 0 : index
    %c0_16 = arith.constant 0 : index
    %35 = vector.load %arg6[%c0_15, %c0_16] : memref<1x128xf32, #tpu.memory_space<vmem>>, vector<1x128xf32>
    %36 = vector.broadcast %35 : vector<1x128xf32> to vector<8x128xf32>
    %37 = arith.addf %34, %36 : vector<8x128xf32>
    %38 = vector.extract_strided_slice %2 {offsets = [0, 512], sizes = [8, 128], strides = [1, 1]} : vector<8x1024xf32> to vector<8x128xf32>
    %39 = math.absf %38 : vector<8x128xf32>
    %40 = vector.extract_strided_slice %2 {offsets = [0, 640], sizes = [8, 128], strides = [1, 1]} : vector<8x1024xf32> to vector<8x128xf32>
    %41 = math.absf %40 : vector<8x128xf32>
    %42 = arith.cmpf ogt, %41, %39 : vector<8x128xf32>
    %43 = arith.select %42, %40, %38 : vector<8x128xi1>, vector<8x128xf32>
    %44 = arith.select %42, %41, %39 : vector<8x128xi1>, vector<8x128xf32>
    %45 = vector.extract_strided_slice %2 {offsets = [0, 768], sizes = [8, 128], strides = [1, 1]} : vector<8x1024xf32> to vector<8x128xf32>
    %46 = math.absf %45 : vector<8x128xf32>
    %47 = arith.cmpf ogt, %46, %44 : vector<8x128xf32>
    %48 = arith.select %47, %45, %43 : vector<8x128xi1>, vector<8x128xf32>
    %49 = arith.select %47, %46, %44 : vector<8x128xi1>, vector<8x128xf32>
    %50 = vector.extract_strided_slice %2 {offsets = [0, 896], sizes = [8, 128], strides = [1, 1]} : vector<8x1024xf32> to vector<8x128xf32>
    %51 = math.absf %50 : vector<8x128xf32>
    %52 = arith.cmpf ogt, %51, %49 : vector<8x128xf32>
    %53 = arith.select %52, %50, %48 : vector<8x128xi1>, vector<8x128xf32>
    %54 = arith.negf %53 : vector<8x128xf32>
    %55 = math.exp %54 : vector<8x128xf32>
    %cst_17 = arith.constant 1.000000e+00 : f32
    %56 = vector.broadcast %cst_17 : f32 to vector<8x128xf32>
    %57 = arith.addf %56, %55 : vector<8x128xf32>
    %58 = arith.divf %56, %57 : vector<8x128xf32>
    %59 = arith.mulf %37, %58 : vector<8x128xf32>
    %cst_18 = arith.constant 0.000000e+00 : f32
    %60 = vector.broadcast %cst_18 : f32 to vector<8x128xf32>
    %61 = arith.maximumf %59, %60 : vector<8x128xf32>
    %c0_19 = arith.constant 0 : index
    %c0_20 = arith.constant 0 : index
    %62 = vector.load %arg7[%c0_19, %c0_20] : memref<128x128xf32, #tpu.memory_space<vmem>>, vector<128x128xf32>
    %cst_21 = arith.constant dense<0.000000e+00> : vector<8x128xf32>
    %63 = tpu.matmul %61, %62, %cst_21 {dimension_numbers = #tpu.dot_dimension_numbers<[1], [0], [0], [1], [0, 0, 1, 1], [], []>} : vector<8x128xf32>, vector<128x128xf32>, vector<8x128xf32> -> vector<8x128xf32>
    %c0_22 = arith.constant 0 : index
    %c0_23 = arith.constant 0 : index
    %64 = vector.load %arg8[%c0_22, %c0_23] : memref<1x128xf32, #tpu.memory_space<vmem>>, vector<1x128xf32>
    %65 = vector.broadcast %64 : vector<1x128xf32> to vector<8x128xf32>
    %66 = arith.addf %63, %65 : vector<8x128xf32>
    %c0_24 = arith.constant 0 : index
    %c0_25 = arith.constant 0 : index
    %67 = vector.load %arg9[%c0_24, %c0_25] : memref<8x128xf32, #tpu.memory_space<vmem>>, vector<8x128xf32>
    tpu.vector_store %arg9[%c0_24, %c0_25], %66 {strides = array<i32>} : memref<8x128xf32, #tpu.memory_space<vmem>>, vector<8x128xf32>,
    return
  }
}

</mosaic_0001>

<llo_original>
// kernel: dendritic_mlp_forward.1
$region0: #{dendritic_mlp_forward.1}
  #allocation0 [shape = 'u32[]', space=smem, size = 0x4, offset = 0x4, fixed_abs, tag = 'smem constant byte address 0x4 - core index']
  #allocation1 [shape = 'u32[72,128]{1,0:T(1,128)}', space=vmem, size = 0x9000, scoped, tag = 'internal scratch']
  %s0 = inlined_call_operand.vmem [shape: f32[8,128], index: 0, kind: input, shape index: {}]
  %s1 = inlined_call_operand.vmem [shape: f32[8,128], index: 1, kind: input, shape index: {}]
  %s2 = inlined_call_operand.hbm [shape: f32[128,1024], index: 2, kind: input, shape index: {}]
  %s3 = inlined_call_operand.hbm [shape: f32[128,128], index: 3, kind: input, shape index: {}]
  %s4 = inlined_call_operand.vmem [shape: f32[1,128], index: 4, kind: input, shape index: {}]
  %s5 = inlined_call_operand.hbm [shape: f32[128,128], index: 5, kind: input, shape index: {}]
  %s6 = inlined_call_operand.vmem [shape: f32[1,128], index: 6, kind: input, shape index: {}]
  %s7 = inlined_call_operand.hbm [shape: f32[128,128], index: 7, kind: input, shape index: {}]
  %s8 = inlined_call_operand.vmem [shape: f32[1,128], index: 8, kind: input, shape index: {}]
  %s9 = inlined_call_operand.vmem [shape: f32[8,128], index: 9, kind: output, shape index: {}]
  %s10 = sld [smem:[#allocation0]]
  $region62: #{dendritic_mlp_forward.1} parent=0
    _
  %s12 = ssub.s32 1, %s10
  %s13 = scalar_select 0, %s12, %s10
  $region1: #{dendritic_mlp_forward.1} parent=0
    #allocation2 [shape = 'u8[524288]{0}', space=vmem, size = 0x80000, scoped, tag = 'input window, operand 2, single buffered']
    #allocation3 [shape = 's32[1]{0}', space=sflag, size = 0x4, scoped, tag = 'scoped memory for dendritic_mlp_forward.1']
    #allocation4 [shape = 'u8[65536]{0}', space=vmem, size = 0x10000, scoped, tag = 'input window, operand 3, single buffered']
    #allocation5 [shape = 's32[1]{0}', space=sflag, size = 0x4, scoped, tag = 'scoped memory for dendritic_mlp_forward.1']
    #allocation6 [shape = 'u8[65536]{0}', space=vmem, size = 0x10000, scoped, tag = 'input window, operand 5, single buffered']
    #allocation7 [shape = 'u8[65536]{0}', space=vmem, size = 0x10000, scoped, tag = 'input window, operand 7, single buffered']
    #allocation8 [shape = 's32[1]{0}', space=sflag, size = 0x4, scoped, tag = 'scoped memory for dendritic_mlp_forward.1']
    %14 = vsyncpa [#allocation3], 0
    %15 = vsyncpa [#allocation5], 0
    %16 = vsyncpa [#allocation8], 0
    // Predicated region
    $region2: #{dendritic_mlp_forward.1} parent=1 // pred_check
      _
    $region3: #{dendritic_mlp_forward.1} parent=1 // pred_check_branch
      %18 = sbr.rel (0) target = $region5
    $region4: #{dendritic_mlp_forward.1} parent=1 // pred_region
      _
    $region5: #{dendritic_mlp_forward.1} parent=1 // pred_fallthru
      _
    // Predicated region
    $region6: #{dendritic_mlp_forward.1} parent=1 // pred_check
      _
    $region7: #{dendritic_mlp_forward.1} parent=1 // pred_check_branch
      %20 = sbr.rel (0) target = $region9
    $region8: #{dendritic_mlp_forward.1} parent=1 // pred_region
      _
    $region9: #{dendritic_mlp_forward.1} parent=1 // pred_fallthru
      _
    // Predicated region
    $region10: #{dendritic_mlp_forward.1} parent=1 // pred_check
      _
    $region11: #{dendritic_mlp_forward.1} parent=1 // pred_check_branch
      %22 = sbr.rel (0) target = $region13
    $region12: #{dendritic_mlp_forward.1} parent=1 // pred_region
      %24 = vsyncadd [#allocation3], 0
      %s25 = sshll.u32 %s2, 4
      %s26 = int_to_ptr.hbm [resolvable:$true] %s25
      %s27 = sshll.u32 [#allocation2], 4
      %s28 = int_to_ptr.vmem [resolvable:$true] %s27
      %33 = dma.hbm_to_vmem [thread:$0]  %s26, 16384, %s28, [#allocation3], 1024, 1024, 64
    $region13: #{dendritic_mlp_forward.1} parent=1 // pred_fallthru
      _
    // Predicated region
    $region14: #{dendritic_mlp_forward.1} parent=1 // pred_check
      _
    $region15: #{dendritic_mlp_forward.1} parent=1 // pred_check_branch
      %35 = sbr.rel (0) target = $region17
    $region16: #{dendritic_mlp_forward.1} parent=1 // pred_region
      %37 = vsyncadd [#allocation5], 0
      %s38 = sshll.u32 %s3, 4
      %s39 = int_to_ptr.hbm [resolvable:$true] %s38
      %s40 = sshll.u32 [#allocation4], 4
      %s41 = int_to_ptr.vmem [resolvable:$true] %s40
      %46 = dma.hbm_to_vmem [thread:$0]  %s39, 2048, %s41, [#allocation5], 128, 128, 8
    $region17: #{dendritic_mlp_forward.1} parent=1 // pred_fallthru
      _
    // Predicated region
    $region18: #{dendritic_mlp_forward.1} parent=1 // pred_check
      _
    $region19: #{dendritic_mlp_forward.1} parent=1 // pred_check_branch
      %48 = sbr.rel (0) target = $region21
    $region20: #{dendritic_mlp_forward.1} parent=1 // pred_region
      _
    $region21: #{dendritic_mlp_forward.1} parent=1 // pred_fallthru
      _
    // Predicated region
    $region22: #{dendritic_mlp_forward.1} parent=1 // pred_check
      _
    $region23: #{dendritic_mlp_forward.1} parent=1 // pred_check_branch
      %50 = sbr.rel (0) target = $region25
    $region24: #{dendritic_mlp_forward.1} parent=1 // pred_region
      %52 = vsyncadd [#allocation5], 0
      %s53 = sshll.u32 %s5, 4
      %s54 = int_to_ptr.hbm [resolvable:$true] %s53
      %s55 = sshll.u32 [#allocation6], 4
      %s56 = int_to_ptr.vmem [resolvable:$true] %s55
      %61 = dma.hbm_to_vmem [thread:$0]  %s54, 2048, %s56, [#allocation5], 128, 128, 8
    $region25: #{dendritic_mlp_forward.1} parent=1 // pred_fallthru
      _
    // Predicated region
    $region26: #{dendritic_mlp_forward.1} parent=1 // pred_check
      _
    $region27: #{dendritic_mlp_forward.1} parent=1 // pred_check_branch
      %63 = sbr.rel (0) target = $region29
    $region28: #{dendritic_mlp_forward.1} parent=1 // pred_region
      _
    $region29: #{dendritic_mlp_forward.1} parent=1 // pred_fallthru
      _
    // Predicated region
    $region30: #{dendritic_mlp_forward.1} parent=1 // pred_check
      _
    $region31: #{dendritic_mlp_forward.1} parent=1 // pred_check_branch
      %65 = sbr.rel (0) target = $region33
    $region32: #{dendritic_mlp_forward.1} parent=1 // pred_region
      %67 = vsyncadd [#allocation8], 0
      %s68 = sshll.u32 %s7, 4
      %s69 = int_to_ptr.hbm [resolvable:$true] %s68
      %s70 = sshll.u32 [#allocation7], 4
      %s71 = int_to_ptr.vmem [resolvable:$true] %s70
      %76 = dma.hbm_to_vmem [thread:$0]  %s69, 2048, %s71, [#allocation8], 128, 128, 8
    $region33: #{dendritic_mlp_forward.1} parent=1 // pred_fallthru
      _
    // Predicated region
    $region34: #{dendritic_mlp_forward.1} parent=1 // pred_check
      _
    $region35: #{dendritic_mlp_forward.1} parent=1 // pred_check_branch
      %78 = sbr.rel (0) target = $region37
    $region36: #{dendritic_mlp_forward.1} parent=1 // pred_region
      _
    $region37: #{dendritic_mlp_forward.1} parent=1 // pred_fallthru
      _
    // Predicated region
    $region38: #{dendritic_mlp_forward.1} parent=1 // pred_check
      _
    $region39: #{dendritic_mlp_forward.1} parent=1 // pred_check_branch
      %80 = sbr.rel (0) target = $region41
    $region40: #{dendritic_mlp_forward.1} parent=1 // pred_region
      %82 = dma.done [#allocation3], 16384
    $region41: #{dendritic_mlp_forward.1} parent=1 // pred_fallthru
      _
    // Predicated region
    $region42: #{dendritic_mlp_forward.1} parent=1 // pred_check
      _
    $region43: #{dendritic_mlp_forward.1} parent=1 // pred_check_branch
      %84 = sbr.rel (0) target = $region45
    $region44: #{dendritic_mlp_forward.1} parent=1 // pred_region
      %86 = dma.done [#allocation5], 2048
    $region45: #{dendritic_mlp_forward.1} parent=1 // pred_fallthru
      _
    // Predicated region
    $region46: #{dendritic_mlp_forward.1} parent=1 // pred_check
      _
    $region47: #{dendritic_mlp_forward.1} parent=1 // pred_check_branch
      %88 = sbr.rel (0) target = $region49
    $region48: #{dendritic_mlp_forward.1} parent=1 // pred_region
      %90 = dma.done [#allocation5], 2048
    $region49: #{dendritic_mlp_forward.1} parent=1 // pred_fallthru
      _
    // Predicated region
    $region50: #{dendritic_mlp_forward.1} parent=1 // pred_check
      _
    $region51: #{dendritic_mlp_forward.1} parent=1 // pred_check_branch
      %92 = sbr.rel (0) target = $region53
    $region52: #{dendritic_mlp_forward.1} parent=1 // pred_region
      %94 = dma.done [#allocation8], 2048
    $region53: #{dendritic_mlp_forward.1} parent=1 // pred_fallthru
      _
    %v95 = vld [vmem:[%s1] sm:$0xff]
    %v96 = vld [vmem:[#allocation2] sm:$0xff]
    %v97 = vld [vmem:[#allocation2 + $0x8] sm:$0xff]
    %v98 = vld [vmem:[#allocation2 + $0x10] sm:$0xff]
    %v99 = vld [vmem:[#allocation2 + $0x18] sm:$0xff]
    %v100 = vld [vmem:[#allocation2 + $0x20] sm:$0xff]
    %v101 = vld [vmem:[#allocation2 + $0x28] sm:$0xff]
    %v102 = vld [vmem:[#allocation2 + $0x30] sm:$0xff]
    %v103 = vld [vmem:[#allocation2 + $0x38] sm:$0xff]
    %v104 = vld [vmem:[#allocation2 + $0x40] sm:$0xff]
    %v105 = vld [vmem:[#allocation2 + $0x48] sm:$0xff]
    %v106 = vld [vmem:[#allocation2 + $0x50] sm:$0xff]
    %v107 = vld [vmem:[#allocation2 + $0x58] sm:$0xff]
    %v108 = vld [vmem:[#allocation2 + $0x60] sm:$0xff]
    %v109 = vld [vmem:[#allocation2 + $0x68] sm:$0xff]
    %v110 = vld [vmem:[#allocation2 + $0x70] sm:$0xff]
    %v111 = vld [vmem:[#allocation2 + $0x78] sm:$0xff]
    %v112 = vld [vmem:[#allocation2 + $0x80] sm:$0xff]
    %v113 = vld [vmem:[#allocation2 + $0x88] sm:$0xff]
    %v114 = vld [vmem:[#allocation2 + $0x90] sm:$0xff]
    %v115 = vld [vmem:[#allocation2 + $0x98] sm:$0xff]
    %v116 = vld [vmem:[#allocation2 + $0xa0] sm:$0xff]
    %v117 = vld [vmem:[#allocation2 + $0xa8] sm:$0xff]
    %v118 = vld [vmem:[#allocation2 + $0xb0] sm:$0xff]
    %v119 = vld [vmem:[#allocation2 + $0xb8] sm:$0xff]
    %v120 = vld [vmem:[#allocation2 + $0xc0] sm:$0xff]
    %v121 = vld [vmem:[#allocation2 + $0xc8] sm:$0xff]
    %v122 = vld [vmem:[#allocation2 + $0xd0] sm:$0xff]
    %v123 = vld [vmem:[#allocation2 + $0xd8] sm:$0xff]
    %v124 = vld [vmem:[#allocation2 + $0xe0] sm:$0xff]
    %v125 = vld [vmem:[#allocation2 + $0xe8] sm:$0xff]
    %v126 = vld [vmem:[#allocation2 + $0xf0] sm:$0xff]
    %v127 = vld [vmem:[#allocation2 + $0xf8] sm:$0xff]
    %v128 = vld [vmem:[#allocation2 + $0x100] sm:$0xff]
    %v129 = vld [vmem:[#allocation2 + $0x108] sm:$0xff]
    %v130 = vld [vmem:[#allocation2 + $0x110] sm:$0xff]
    %v131 = vld [vmem:[#allocation2 + $0x118] sm:$0xff]
    %v132 = vld [vmem:[#allocation2 + $0x120] sm:$0xff]
    %v133 = vld [vmem:[#allocation2 + $0x128] sm:$0xff]
    %v134 = vld [vmem:[#allocation2 + $0x130] sm:$0xff]
    %v135 = vld [vmem:[#allocation2 + $0x138] sm:$0xff]
    %v136 = vld [vmem:[#allocation2 + $0x140] sm:$0xff]
    %v137 = vld [vmem:[#allocation2 + $0x148] sm:$0xff]
    %v138 = vld [vmem:[#allocation2 + $0x150] sm:$0xff]
    %v139 = vld [vmem:[#allocation2 + $0x158] sm:$0xff]
    %v140 = vld [vmem:[#allocation2 + $0x160] sm:$0xff]
    %v141 = vld [vmem:[#allocation2 + $0x168] sm:$0xff]
    %v142 = vld [vmem:[#allocation2 + $0x170] sm:$0xff]
    %v143 = vld [vmem:[#allocation2 + $0x178] sm:$0xff]
    %v144 = vld [vmem:[#allocation2 + $0x180] sm:$0xff]
    %v145 = vld [vmem:[#allocation2 + $0x188] sm:$0xff]
    %v146 = vld [vmem:[#allocation2 + $0x190] sm:$0xff]
    %v147 = vld [vmem:[#allocation2 + $0x198] sm:$0xff]
    %v148 = vld [vmem:[#allocation2 + $0x1a0] sm:$0xff]
    %v149 = vld [vmem:[#allocation2 + $0x1a8] sm:$0xff]
    %v150 = vld [vmem:[#allocation2 + $0x1b0] sm:$0xff]
    %v151 = vld [vmem:[#allocation2 + $0x1b8] sm:$0xff]
    %v152 = vld [vmem:[#allocation2 + $0x1c0] sm:$0xff]
    %v153 = vld [vmem:[#allocation2 + $0x1c8] sm:$0xff]
    %v154 = vld [vmem:[#allocation2 + $0x1d0] sm:$0xff]
    %v155 = vld [vmem:[#allocation2 + $0x1d8] sm:$0xff]
    %v156 = vld [vmem:[#allocation2 + $0x1e0] sm:$0xff]
    %v157 = vld [vmem:[#allocation2 + $0x1e8] sm:$0xff]
    %v158 = vld [vmem:[#allocation2 + $0x1f0] sm:$0xff]
    %v159 = vld [vmem:[#allocation2 + $0x1f8] sm:$0xff]
    %v160 = vld [vmem:[#allocation2 + $0x200] sm:$0xff]
    %v161 = vld [vmem:[#allocation2 + $0x208] sm:$0xff]
    %v162 = vld [vmem:[#allocation2 + $0x210] sm:$0xff]
    %v163 = vld [vmem:[#allocation2 + $0x218] sm:$0xff]
    %v164 = vld [vmem:[#allocation2 + $0x220] sm:$0xff]
    %v165 = vld [vmem:[#allocation2 + $0x228] sm:$0xff]
    %v166 = vld [vmem:[#allocation2 + $0x230] sm:$0xff]
    %v167 = vld [vmem:[#allocation2 + $0x238] sm:$0xff]
    %v168 = vld [vmem:[#allocation2 + $0x240] sm:$0xff]
    %v169 = vld [vmem:[#allocation2 + $0x248] sm:$0xff]
    %v170 = vld [vmem:[#allocation2 + $0x250] sm:$0xff]
    %v171 = vld [vmem:[#allocation2 + $0x258] sm:$0xff]
    %v172 = vld [vmem:[#allocation2 + $0x260] sm:$0xff]
    %v173 = vld [vmem:[#allocation2 + $0x268] sm:$0xff]
    %v174 = vld [vmem:[#allocation2 + $0x270] sm:$0xff]
    %v175 = vld [vmem:[#allocation2 + $0x278] sm:$0xff]
    %v176 = vld [vmem:[#allocation2 + $0x280] sm:$0xff]
    %v177 = vld [vmem:[#allocation2 + $0x288] sm:$0xff]
    %v178 = vld [vmem:[#allocation2 + $0x290] sm:$0xff]
    %v179 = vld [vmem:[#allocation2 + $0x298] sm:$0xff]
    %v180 = vld [vmem:[#allocation2 + $0x2a0] sm:$0xff]
    %v181 = vld [vmem:[#allocation2 + $0x2a8] sm:$0xff]
    %v182 = vld [vmem:[#allocation2 + $0x2b0] sm:$0xff]
    %v183 = vld [vmem:[#allocation2 + $0x2b8] sm:$0xff]
    %v184 = vld [vmem:[#allocation2 + $0x2c0] sm:$0xff]
    %v185 = vld [vmem:[#allocation2 + $0x2c8] sm:$0xff]
    %v186 = vld [vmem:[#allocation2 + $0x2d0] sm:$0xff]
    %v187 = vld [vmem:[#allocation2 + $0x2d8] sm:$0xff]
    %v188 = vld [vmem:[#allocation2 + $0x2e0] sm:$0xff]
    %v189 = vld [vmem:[#allocation2 + $0x2e8] sm:$0xff]
    %v190 = vld [vmem:[#allocation2 + $0x2f0] sm:$0xff]
    %v191 = vld [vmem:[#allocation2 + $0x2f8] sm:$0xff]
    %v192 = vld [vmem:[#allocation2 + $0x300] sm:$0xff]
    %v193 = vld [vmem:[#allocation2 + $0x308] sm:$0xff]
    %v194 = vld [vmem:[#allocation2 + $0x310] sm:$0xff]
    %v195 = vld [vmem:[#allocation2 + $0x318] sm:$0xff]
    %v196 = vld [vmem:[#allocation2 + $0x320] sm:$0xff]
    %v197 = vld [vmem:[#allocation2 + $0x328] sm:$0xff]
    %v198 = vld [vmem:[#allocation2 + $0x330] sm:$0xff]
    %v199 = vld [vmem:[#allocation2 + $0x338] sm:$0xff]
    %v200 = vld [vmem:[#allocation2 + $0x340] sm:$0xff]
    %v201 = vld [vmem:[#allocation2 + $0x348] sm:$0xff]
    %v202 = vld [vmem:[#allocation2 + $0x350] sm:$0xff]
    %v203 = vld [vmem:[#allocation2 + $0x358] sm:$0xff]
    %v204 = vld [vmem:[#allocation2 + $0x360] sm:$0xff]
    %v205 = vld [vmem:[#allocation2 + $0x368] sm:$0xff]
    %v206 = vld [vmem:[#allocation2 + $0x370] sm:$0xff]
    %v207 = vld [vmem:[#allocation2 + $0x378] sm:$0xff]
    %v208 = vld [vmem:[#allocation2 + $0x380] sm:$0xff]
    %v209 = vld [vmem:[#allocation2 + $0x388] sm:$0xff]
    %v210 = vld [vmem:[#allocation2 + $0x390] sm:$0xff]
    %v211 = vld [vmem:[#allocation2 + $0x398] sm:$0xff]
    %v212 = vld [vmem:[#allocation2 + $0x3a0] sm:$0xff]
    %v213 = vld [vmem:[#allocation2 + $0x3a8] sm:$0xff]
    %v214 = vld [vmem:[#allocation2 + $0x3b0] sm:$0xff]
    %v215 = vld [vmem:[#allocation2 + $0x3b8] sm:$0xff]
    %v216 = vld [vmem:[#allocation2 + $0x3c0] sm:$0xff]
    %v217 = vld [vmem:[#allocation2 + $0x3c8] sm:$0xff]
    %v218 = vld [vmem:[#allocation2 + $0x3d0] sm:$0xff]
    %v219 = vld [vmem:[#allocation2 + $0x3d8] sm:$0xff]
    %v220 = vld [vmem:[#allocation2 + $0x3e0] sm:$0xff]
    %v221 = vld [vmem:[#allocation2 + $0x3e8] sm:$0xff]
    %v222 = vld [vmem:[#allocation2 + $0x3f0] sm:$0xff]
    %v223 = vld [vmem:[#allocation2 + $0x3f8] sm:$0xff]
    %224 = vmatpush.msra.mxu0 %v216
    %225 = vmatpush.msra.mxu0 %v208
    %226 = vmatpush.msra.mxu0 %v200
    %227 = vmatpush.msra.mxu0 %v192
    %228 = vmatpush.msra.mxu0 %v184
    %229 = vmatpush.msra.mxu0 %v176
    %230 = vmatpush.msra.mxu0 %v168
    %231 = vmatpush.msra.mxu0 %v160
    %232 = vmatpush.msra.mxu0 %v152
    %233 = vmatpush.msra.mxu0 %v144
    %234 = vmatpush.msra.mxu0 %v136
    %235 = vmatpush.msra.mxu0 %v128
    %236 = vmatpush.msra.mxu0 %v120
    %237 = vmatpush.msra.mxu0 %v112
    %238 = vmatpush.msra.mxu0 %v104
    %239 = vmatpush.msra.mxu0 %v96
    %240 = vmatmul.f32.gmra.mxu0 %v95
    %v241 = vpop.f32.mrf.mxu0
    %v242 = vadd.f32 0.0, %v241
    %243 = vdwg.mxu0
    %244 = vmatpush.msra.mxu0 %v217
    %245 = vmatpush.msra.mxu0 %v209
    %246 = vmatpush.msra.mxu0 %v201
    %247 = vmatpush.msra.mxu0 %v193
    %248 = vmatpush.msra.mxu0 %v185
    %249 = vmatpush.msra.mxu0 %v177
    %250 = vmatpush.msra.mxu0 %v169
    %251 = vmatpush.msra.mxu0 %v161
    %252 = vmatpush.msra.mxu0 %v153
    %253 = vmatpush.msra.mxu0 %v145
    %254 = vmatpush.msra.mxu0 %v137
    %255 = vmatpush.msra.mxu0 %v129
    %256 = vmatpush.msra.mxu0 %v121
    %257 = vmatpush.msra.mxu0 %v113
    %258 = vmatpush.msra.mxu0 %v105
    %259 = vmatpush.msra.mxu0 %v97
    %260 = vmatmul.f32.gmra.mxu0 %v95
    %v261 = vpop.f32.mrf.mxu0
    %v262 = vadd.f32 0.0, %v261
    %263 = vdwg.mxu0
    %264 = vmatpush.msra.mxu0 %v218
    %265 = vmatpush.msra.mxu0 %v210
    %266 = vmatpush.msra.mxu0 %v202
    %267 = vmatpush.msra.mxu0 %v194
    %268 = vmatpush.msra.mxu0 %v186
    %269 = vmatpush.msra.mxu0 %v178
    %270 = vmatpush.msra.mxu0 %v170
    %271 = vmatpush.msra.mxu0 %v162
    %272 = vmatpush.msra.mxu0 %v154
    %273 = vmatpush.msra.mxu0 %v146
    %274 = vmatpush.msra.mxu0 %v138
    %275 = vmatpush.msra.mxu0 %v130
    %276 = vmatpush.msra.mxu0 %v122
    %277 = vmatpush.msra.mxu0 %v114
    %278 = vmatpush.msra.mxu0 %v106
    %279 = vmatpush.msra.mxu0 %v98
    %280 = vmatmul.f32.gmra.mxu0 %v95
    %v281 = vpop.f32.mrf.mxu0
    %v282 = vadd.f32 0.0, %v281
    %283 = vdwg.mxu0
    %284 = vmatpush.msra.mxu0 %v219
    %285 = vmatpush.msra.mxu0 %v211
    %286 = vmatpush.msra.mxu0 %v203
    %287 = vmatpush.msra.mxu0 %v195
    %288 = vmatpush.msra.mxu0 %v187
    %289 = vmatpush.msra.mxu0 %v179
    %290 = vmatpush.msra.mxu0 %v171
    %291 = vmatpush.msra.mxu0 %v163
    %292 = vmatpush.msra.mxu0 %v155
    %293 = vmatpush.msra.mxu0 %v147
    %294 = vmatpush.msra.mxu0 %v139
    %295 = vmatpush.msra.mxu0 %v131
    %296 = vmatpush.msra.mxu0 %v123
    %297 = vmatpush.msra.mxu0 %v115
    %298 = vmatpush.msra.mxu0 %v107
    %299 = vmatpush.msra.mxu0 %v99
    %300 = vmatmul.f32.gmra.mxu0 %v95
    %v301 = vpop.f32.mrf.mxu0
    %v302 = vadd.f32 0.0, %v301
    %303 = vdwg.mxu0
    %304 = vmatpush.msra.mxu0 %v220
    %305 = vmatpush.msra.mxu0 %v212
    %306 = vmatpush.msra.mxu0 %v204
    %307 = vmatpush.msra.mxu0 %v196
    %308 = vmatpush.msra.mxu0 %v188
    %309 = vmatpush.msra.mxu0 %v180
    %310 = vmatpush.msra.mxu0 %v172
    %311 = vmatpush.msra.mxu0 %v164
    %312 = vmatpush.msra.mxu0 %v156
    %313 = vmatpush.msra.mxu0 %v148
    %314 = vmatpush.msra.mxu0 %v140
    %315 = vmatpush.msra.mxu0 %v132
    %316 = vmatpush.msra.mxu0 %v124
    %317 = vmatpush.msra.mxu0 %v116
    %318 = vmatpush.msra.mxu0 %v108
    %319 = vmatpush.msra.mxu0 %v100
    %320 = vmatmul.f32.gmra.mxu0 %v95
    %v321 = vpop.f32.mrf.mxu0
    %v322 = vadd.f32 0.0, %v321
    %323 = vdwg.mxu0
    %324 = vmatpush.msra.mxu0 %v221
    %325 = vmatpush.msra.mxu0 %v213
    %326 = vmatpush.msra.mxu0 %v205
    %327 = vmatpush.msra.mxu0 %v197
    %328 = vmatpush.msra.mxu0 %v189
    %329 = vmatpush.msra.mxu0 %v181
    %330 = vmatpush.msra.mxu0 %v173
    %331 = vmatpush.msra.mxu0 %v165
    %332 = vmatpush.msra.mxu0 %v157
    %333 = vmatpush.msra.mxu0 %v149
    %334 = vmatpush.msra.mxu0 %v141
    %335 = vmatpush.msra.mxu0 %v133
    %336 = vmatpush.msra.mxu0 %v125
    %337 = vmatpush.msra.mxu0 %v117
    %338 = vmatpush.msra.mxu0 %v109
    %339 = vmatpush.msra.mxu0 %v101
    %340 = vmatmul.f32.gmra.mxu0 %v95
    %v341 = vpop.f32.mrf.mxu0
    %v342 = vadd.f32 0.0, %v341
    %343 = vdwg.mxu0
    %344 = vmatpush.msra.mxu0 %v222
    %345 = vmatpush.msra.mxu0 %v214
    %346 = vmatpush.msra.mxu0 %v206
    %347 = vmatpush.msra.mxu0 %v198
    %348 = vmatpush.msra.mxu0 %v190
    %349 = vmatpush.msra.mxu0 %v182
    %350 = vmatpush.msra.mxu0 %v174
    %351 = vmatpush.msra.mxu0 %v166
    %352 = vmatpush.msra.mxu0 %v158
    %353 = vmatpush.msra.mxu0 %v150
    %354 = vmatpush.msra.mxu0 %v142
    %355 = vmatpush.msra.mxu0 %v134
    %356 = vmatpush.msra.mxu0 %v126
    %357 = vmatpush.msra.mxu0 %v118
    %358 = vmatpush.msra.mxu0 %v110
    %359 = vmatpush.msra.mxu0 %v102
    %360 = vmatmul.f32.gmra.mxu0 %v95
    %v361 = vpop.f32.mrf.mxu0
    %v362 = vadd.f32 0.0, %v361
    %363 = vdwg.mxu0
    %364 = vmatpush.msra.mxu0 %v223
    %365 = vmatpush.msra.mxu0 %v215
    %366 = vmatpush.msra.mxu0 %v207
    %367 = vmatpush.msra.mxu0 %v199
    %368 = vmatpush.msra.mxu0 %v191
    %369 = vmatpush.msra.mxu0 %v183
    %370 = vmatpush.msra.mxu0 %v175
    %371 = vmatpush.msra.mxu0 %v167
    %372 = vmatpush.msra.mxu0 %v159
    %373 = vmatpush.msra.mxu0 %v151
    %374 = vmatpush.msra.mxu0 %v143
    %375 = vmatpush.msra.mxu0 %v135
    %376 = vmatpush.msra.mxu0 %v127
    %377 = vmatpush.msra.mxu0 %v119
    %378 = vmatpush.msra.mxu0 %v111
    %379 = vmatpush.msra.mxu0 %v103
    %380 = vmatmul.f32.gmra.mxu0 %v95
    %v381 = vpop.f32.mrf.mxu0
    %v382 = vadd.f32 0.0, %v381
    %383 = vdwg.mxu0
    %v384 = vld [vmem:[%s0] sm:$0xff]
    %v385 = vld [vmem:[#allocation4] sm:$0xff]
    %v386 = vld [vmem:[#allocation4 + $0x8] sm:$0xff]
    %v387 = vld [vmem:[#allocation4 + $0x10] sm:$0xff]
    %v388 = vld [vmem:[#allocation4 + $0x18] sm:$0xff]
    %v389 = vld [vmem:[#allocation4 + $0x20] sm:$0xff]
    %v390 = vld [vmem:[#allocation4 + $0x28] sm:$0xff]
    %v391 = vld [vmem:[#allocation4 + $0x30] sm:$0xff]
    %v392 = vld [vmem:[#allocation4 + $0x38] sm:$0xff]
    %v393 = vld [vmem:[#allocation4 + $0x40] sm:$0xff]
    %v394 = vld [vmem:[#allocation4 + $0x48] sm:$0xff]
    %v395 = vld [vmem:[#allocation4 + $0x50] sm:$0xff]
    %v396 = vld [vmem:[#allocation4 + $0x58] sm:$0xff]
    %v397 = vld [vmem:[#allocation4 + $0x60] sm:$0xff]
    %v398 = vld [vmem:[#allocation4 + $0x68] sm:$0xff]
    %v399 = vld [vmem:[#allocation4 + $0x70] sm:$0xff]
    %v400 = vld [vmem:[#allocation4 + $0x78] sm:$0xff]
    %v401 = vld [vmem:[%s4] sm:$0x1]
    %v403 = vperm.slane %v401, 0
    %405 = vmatpush.msra.mxu0 %v400
    %406 = vmatpush.msra.mxu0 %v399
    %407 = vmatpush.msra.mxu0 %v398
    %408 = vmatpush.msra.mxu0 %v397
    %409 = vmatpush.msra.mxu0 %v396
    %410 = vmatpush.msra.mxu0 %v395
    %411 = vmatpush.msra.mxu0 %v394
    %412 = vmatpush.msra.mxu0 %v393
    %413 = vmatpush.msra.mxu0 %v392
    %414 = vmatpush.msra.mxu0 %v391
    %415 = vmatpush.msra.mxu0 %v390
    %416 = vmatpush.msra.mxu0 %v389
    %417 = vmatpush.msra.mxu0 %v388
    %418 = vmatpush.msra.mxu0 %v387
    %419 = vmatpush.msra.mxu0 %v386
    %420 = vmatpush.msra.mxu0 %v385
    %421 = vmatmul.f32.gmra.mxu0 %v384
    %v422 = vpop.f32.mrf.mxu0
    %v423 = vadd.f32 %v403, %v422
    %424 = vdwg.mxu0
    %v425 = vand.u32 2147483647, %v242
    %v426 = vand.u32 2147483647, %v262
    %vm427 = vcmp.gt.f32.partialorder %v426, %v425
    %v428 = vsel %vm427, %v262, %v242
    %v429 = vsel %vm427, %v426, %v425
    %v430 = vand.u32 2147483647, %v282
    %vm431 = vcmp.gt.f32.partialorder %v430, %v429
    %v432 = vsel %vm431, %v282, %v428
    %v433 = vsel %vm431, %v430, %v429
    %v434 = vand.u32 2147483647, %v302
    %vm435 = vcmp.gt.f32.partialorder %v434, %v433
    %v436 = vsel %vm435, %v302, %v432
    %v437 = vxor.u32 %v436, 2147483648
    %v438 = vmul.f32 %v437, 1.442695
    %v439 = vpow.pop %v438
    %v440 = vadd.f32 %v439, 1.0
    %v441 = vrcp.pop %v440
    %v442 = vmul.f32 %v440, %v441
    %v443 = vsub.f32 1.0, %v442
    %v444 = vmul.f32 %v441, %v443
    %v445 = vadd.f32 %v441, %v444
    %vm446 = vweird.f32 %v440
    %vm447 = vweird.f32 %v441
    %vm448 = vmor %vm446, %vm447
    %v449 = vsel %vm448, %v441, %v445
    %v450 = vand.u32 2147483647, %v440
    %vm451 = vcmp.eq.f32.partialorder %v450, 8.507059e+37
    %v452 = vand.u32 %v440, 2147483648
    %v453 = vor.u32 1.1754944e-38, %v452
    %v454 = vsel %vm451, %v453, %v449
    %v455 = vmul.f32 1.0, %v454
    %v456 = vmul.f32 %v423, %v455
    %v457 = vmax.f32 %v456, 0.0
    %v458 = vld [vmem:[#allocation6] sm:$0xff]
    %v459 = vld [vmem:[#allocation6 + $0x8] sm:$0xff]
    %v460 = vld [vmem:[#allocation6 + $0x10] sm:$0xff]
    %v461 = vld [vmem:[#allocation6 + $0x18] sm:$0xff]
    %v462 = vld [vmem:[#allocation6 + $0x20] sm:$0xff]
    %v463 = vld [vmem:[#allocation6 + $0x28] sm:$0xff]
    %v464 = vld [vmem:[#allocation6 + $0x30] sm:$0xff]
    %v465 = vld [vmem:[#allocation6 + $0x38] sm:$0xff]
    %v466 = vld [vmem:[#allocation6 + $0x40] sm:$0xff]
    %v467 = vld [vmem:[#allocation6 + $0x48] sm:$0xff]
    %v468 = vld [vmem:[#allocation6 + $0x50] sm:$0xff]
    %v469 = vld [vmem:[#allocation6 + $0x58] sm:$0xff]
    %v470 = vld [vmem:[#allocation6 + $0x60] sm:$0xff]
    %v471 = vld [vmem:[#allocation6 + $0x68] sm:$0xff]
    %v472 = vld [vmem:[#allocation6 + $0x70] sm:$0xff]
    %v473 = vld [vmem:[#allocation6 + $0x78] sm:$0xff]
    %v474 = vld [vmem:[%s6] sm:$0x1]
    %v476 = vperm.slane %v474, 0
    %478 = vmatpush.msra.mxu0 %v473
    %479 = vmatpush.msra.mxu0 %v472
    %480 = vmatpush.msra.mxu0 %v471
    %481 = vmatpush.msra.mxu0 %v470
    %482 = vmatpush.msra.mxu0 %v469
    %483 = vmatpush.msra.mxu0 %v468
    %484 = vmatpush.msra.mxu0 %v467
    %485 = vmatpush.msra.mxu0 %v466
    %486 = vmatpush.msra.mxu0 %v465
    %487 = vmatpush.msra.mxu0 %v464
    %488 = vmatpush.msra.mxu0 %v463
    %489 = vmatpush.msra.mxu0 %v462
    %490 = vmatpush.msra.mxu0 %v461
    %491 = vmatpush.msra.mxu0 %v460
    %492 = vmatpush.msra.mxu0 %v459
    %493 = vmatpush.msra.mxu0 %v458
    %494 = vmatmul.f32.gmra.mxu0 %v457
    %v495 = vpop.f32.mrf.mxu0
    %v496 = vadd.f32 %v476, %v495
    %497 = vdwg.mxu0
    %v498 = vand.u32 2147483647, %v322
    %v499 = vand.u32 2147483647, %v342
    %vm500 = vcmp.gt.f32.partialorder %v499, %v498
    %v501 = vsel %vm500, %v342, %v322
    %v502 = vsel %vm500, %v499, %v498
    %v503 = vand.u32 2147483647, %v362
    %vm504 = vcmp.gt.f32.partialorder %v503, %v502
    %v505 = vsel %vm504, %v362, %v501
    %v506 = vsel %vm504, %v503, %v502
    %v507 = vand.u32 2147483647, %v382
    %vm508 = vcmp.gt.f32.partialorder %v507, %v506
    %v509 = vsel %vm508, %v382, %v505
    %v510 = vxor.u32 %v509, 2147483648
    %v511 = vmul.f32 %v510, 1.442695
    %v512 = vpow.pop %v511
    %v513 = vadd.f32 %v512, 1.0
    %v514 = vrcp.pop %v513
    %v515 = vmul.f32 %v513, %v514
    %v516 = vsub.f32 1.0, %v515
    %v517 = vmul.f32 %v514, %v516
    %v518 = vadd.f32 %v514, %v517
    %vm519 = vweird.f32 %v513
    %vm520 = vweird.f32 %v514
    %vm521 = vmor %vm519, %vm520
    %v522 = vsel %vm521, %v514, %v518
    %v523 = vand.u32 2147483647, %v513
    %vm524 = vcmp.eq.f32.partialorder %v523, 8.507059e+37
    %v525 = vand.u32 %v513, 2147483648
    %v526 = vor.u32 1.1754944e-38, %v525
    %v527 = vsel %vm524, %v526, %v522
    %v528 = vmul.f32 1.0, %v527
    %v529 = vmul.f32 %v496, %v528
    %v530 = vmax.f32 %v529, 0.0
    %v531 = vld [vmem:[#allocation7] sm:$0xff]
    %v532 = vld [vmem:[#allocation7 + $0x8] sm:$0xff]
    %v533 = vld [vmem:[#allocation7 + $0x10] sm:$0xff]
    %v534 = vld [vmem:[#allocation7 + $0x18] sm:$0xff]
    %v535 = vld [vmem:[#allocation7 + $0x20] sm:$0xff]
    %v536 = vld [vmem:[#allocation7 + $0x28] sm:$0xff]
    %v537 = vld [vmem:[#allocation7 + $0x30] sm:$0xff]
    %v538 = vld [vmem:[#allocation7 + $0x38] sm:$0xff]
    %v539 = vld [vmem:[#allocation7 + $0x40] sm:$0xff]
    %v540 = vld [vmem:[#allocation7 + $0x48] sm:$0xff]
    %v541 = vld [vmem:[#allocation7 + $0x50] sm:$0xff]
    %v542 = vld [vmem:[#allocation7 + $0x58] sm:$0xff]
    %v543 = vld [vmem:[#allocation7 + $0x60] sm:$0xff]
    %v544 = vld [vmem:[#allocation7 + $0x68] sm:$0xff]
    %v545 = vld [vmem:[#allocation7 + $0x70] sm:$0xff]
    %v546 = vld [vmem:[#allocation7 + $0x78] sm:$0xff]
    %v547 = vld [vmem:[%s8] sm:$0x1]
    %v549 = vperm.slane %v547, 0
    %551 = vmatpush.msra.mxu0 %v546
    %552 = vmatpush.msra.mxu0 %v545
    %553 = vmatpush.msra.mxu0 %v544
    %554 = vmatpush.msra.mxu0 %v543
    %555 = vmatpush.msra.mxu0 %v542
    %556 = vmatpush.msra.mxu0 %v541
    %557 = vmatpush.msra.mxu0 %v540
    %558 = vmatpush.msra.mxu0 %v539
    %559 = vmatpush.msra.mxu0 %v538
    %560 = vmatpush.msra.mxu0 %v537
    %561 = vmatpush.msra.mxu0 %v536
    %562 = vmatpush.msra.mxu0 %v535
    %563 = vmatpush.msra.mxu0 %v534
    %564 = vmatpush.msra.mxu0 %v533
    %565 = vmatpush.msra.mxu0 %v532
    %566 = vmatpush.msra.mxu0 %v531
    %567 = vmatmul.f32.gmra.mxu0 %v530
    %v568 = vpop.f32.mrf.mxu0
    %v569 = vadd.f32 %v549, %v568
    %570 = vdwg.mxu0
    %571 = vst [vmem:[%s9] sm:$0xff] %v569
    // Predicated region
    $region54: #{dendritic_mlp_forward.1} parent=1 // pred_check
      _
    $region55: #{dendritic_mlp_forward.1} parent=1 // pred_check_branch
      %573 = sbr.rel (0) target = $region57
    $region56: #{dendritic_mlp_forward.1} parent=1 // pred_region
      _
    $region57: #{dendritic_mlp_forward.1} parent=1 // pred_fallthru
      _
    // Predicated region
    $region58: #{dendritic_mlp_forward.1} parent=1 // pred_check
      _
    $region59: #{dendritic_mlp_forward.1} parent=1 // pred_check_branch
      %575 = sbr.rel (0) target = $region61
    $region60: #{dendritic_mlp_forward.1} parent=1 // pred_region
      _
    $region61: #{dendritic_mlp_forward.1} parent=1 // pred_fallthru
      _
    %576 = vsyncpa [#allocation3], 1
    %577 = vsyncpa [#allocation5], 1
    %578 = vsyncpa [#allocation8], 1

</llo_original>
